<compile_context>
chip_gen: v7x
topology: tpu7x:2x2x1
jax: 0.10.0
libtpu: 0.0.40
codegen_flags: <defaults>
</compile_context>

<pallas_src>
import functools
import math

import jax
import jax.numpy as jnp
from jax.experimental import pallas as pl
from jax.experimental.pallas import tpu as pltpu


def _scale_kernel(q_ref, o_ref, *, sqrt_val: float):
    # Pure elementwise hot path: divide the whole VMEM tile by the compile-time
    # constant sqrt(head_dim), exactly matching PyTorch's `query / sqrt_val`.
    # `sqrt_val` is a weakly-typed Python float, so bf16 inputs stay bf16.
    o_ref[...] = (q_ref[...] / sqrt_val).astype(o_ref.dtype)


def _default_tile_bytes() -> int:
    # v7x: ~3.2 TB/s HBM but only 64 MiB VMEM per TC -> bigger tiles amortize
    # the ~0.35 us per-grid-step overhead.  4 MiB is the all-chip-safe default
    # (2 bufs x (in + out) x 4 MiB = 16 MiB of scoped VMEM).
    try:
        info = pltpu.get_tpu_info()
        vmem = getattr(info, "vmem_capacity_bytes", None)
        if vmem is not None and vmem <= 96 * 1024 * 1024:  # v7x-class TensorCore
            return 6 * 1024 * 1024
    except Exception:
        pass
    return 4 * 1024 * 1024


def _pick_lanes(n: int, proj_size: int) -> int:
    # Any multiple of 128 lanes already gives unmasked full-width vector stores
    # (the measured lever); prefer a width that divides n so no pad is needed.
    candidates = {1024, 512, 256, 128}
    if proj_size % 128 == 0:
        candidates.add(proj_size)
    for lanes in sorted(candidates, reverse=True):
        if n % lanes == 0:
            return lanes
    return 128  # rare fallback: needs a pad copy


def _sublane_multiple(dtype) -> int:
    # Native packed tiling: (8,128) f32, (16,128) bf16, (32,128) int8/fp8.
    itemsize = jnp.dtype(dtype).itemsize
    return max(8, 32 // itemsize)


def _build_call(rows, lanes, tile_rows, grid_r, dtype, sqrt_val, semantics, vmem_limit):
    itemsize = jnp.dtype(dtype).itemsize
    return pl.pallas_call(
        functools.partial(_scale_kernel, sqrt_val=sqrt_val),
        out_shape=jax.ShapeDtypeStruct((rows, lanes), dtype),
        grid_spec=pltpu.PrefetchScalarGridSpec(
            num_scalar_prefetch=0,
            grid=(grid_r,),
            in_specs=[pl.BlockSpec((tile_rows, lanes), lambda i: (i, 0))],
            out_specs=pl.BlockSpec((tile_rows, lanes), lambda i: (i, 0)),
        ),
        input_output_aliases={0: 0},
        cost_estimate=pl.CostEstimate(
            flops=rows * lanes,
            transcendentals=0,
            bytes_accessed=2 * rows * lanes * itemsize,
        ),
        compiler_params=pltpu.CompilerParams(
            dimension_semantics=semantics,
            vmem_limit_bytes=vmem_limit,
        ),
    )


def esm2_query_scaling(query: jax.Array, kv_channels: int, num_attention_heads: int,
                       *, tile_bytes: int | None = None) -> jax.Array:
    """query / sqrt(hidden_size_per_attention_head), matching ESM2QueryScaling."""
    projection_size = kv_channels * num_attention_heads
    hidden_size_per_attention_head = projection_size // num_attention_heads
    sqrt_val = math.sqrt(hidden_size_per_attention_head)

    orig_shape = query.shape
    n = math.prod(orig_shape)
    if n == 0:
        return query

    if tile_bytes is None:
        tile_bytes = _default_tile_bytes()

    # Lane-dense 2-D slab, no pad in the common case.
    lanes = _pick_lanes(n, projection_size)
    padded_n = ((n + lanes - 1) // lanes) * lanes
    flat = query.reshape(-1)
    if padded_n != n:
        # Rare fallback (no lane width divides n); costs one extra HBM copy.
        flat = jnp.pad(flat, (0, padded_n - n))
    rows = padded_n // lanes
    q2d = flat.reshape(rows, lanes)

    # Row tile: ~tile_bytes per input buffer, rounded to the packed sublane tile.
    itemsize = jnp.dtype(query.dtype).itemsize
    sub = _sublane_multiple(query.dtype)
    cap = max(sub, (tile_bytes // (lanes * itemsize)) // sub * sub)
    if rows <= cap:
        tile_rows = rows          # single block == full array extent (always legal)
        grid_r = 1
    else:
        tile_rows = cap           # multiple of (sub, 128); trailing block may be ragged
        grid_r = pl.cdiv(rows, tile_rows)

    # Headroom for 2 buffers x (in + out); never above v7x's 64 MiB physical VMEM.
    vmem_limit = max(32 * 1024 * 1024,
                     min(4 * tile_bytes + 16 * 1024 * 1024, 64 * 1024 * 1024))

    # Prefer CORE_PARALLEL (v7x: both TensorCores stream half the rows) when the
    # grid is even and >= 2; fall back to plain "parallel" if rejected.
    semantics_options = []
    if grid_r >= 2 and grid_r % 2 == 0:
        semantics_options.append((pltpu.CORE_PARALLEL,))
    semantics_options.append(("parallel",))

    out2d = None
    last_err = None
    for semantics in semantics_options:
        try:
            out2d = _build_call(rows, lanes, tile_rows, grid_r, query.dtype,
                                sqrt_val, semantics, vmem_limit)(q2d)
            break
        except Exception as e:  # CORE_PARALLEL unsupported on this chip/runtime
            last_err = e
            out2d = None
    if out2d is None:
        raise last_err

    if padded_n != n:
        return out2d.reshape(-1)[:n].reshape(orig_shape)
    return out2d.reshape(orig_shape)


if __name__ == "__main__":
    # "Config": kv_channels=32, num_attention_heads=4 -> head_dim = 32.
    kv_channels = 32
    num_attention_heads = 4
    head_dim = kv_channels
    sqrt_val = math.sqrt(head_dim)
    key = jax.random.PRNGKey(0)

    # Test 1: small ESM2-like query (seq, batch, heads, head_dim), single block.
    q1 = jax.random.normal(key, (8, 2, num_attention_heads, head_dim), dtype=jnp.float32)
    out1 = jax.block_until_ready(esm2_query_scaling(q1, kv_channels, num_attention_heads))
    exp1 = q1 / sqrt_val
    assert out1.shape == q1.shape and out1.dtype == q1.dtype
    assert jnp.allclose(out1, exp1, rtol=1e-6, atol=1e-6)

    # Test 2: forced tiny tile -> multi-block ragged grid (unpadded trailing block).
    q2 = jax.random.normal(key, (33, 2, num_attention_heads, head_dim), dtype=jnp.float32)
    out2 = jax.block_until_ready(
        esm2_query_scaling(q2, kv_channels, num_attention_heads, tile_bytes=4096))
    assert out2.shape == q2.shape and out2.dtype == q2.dtype
    assert jnp.allclose(out2, q2 / sqrt_val, rtol=1e-6, atol=1e-6)

    # Test 3: bf16 path (packed sublane handling, no dtype promotion).
    q3 = jax.random.normal(key, (5, 2, num_attention_heads, head_dim), dtype=jnp.bfloat16)
    out3 = jax.block_until_ready(esm2_query_scaling(q3, kv_channels, num_attention_heads))
    exp3 = q3 / sqrt_val
    assert out3.shape == q3.shape and out3.dtype == jnp.bfloat16
    assert jnp.allclose(out3.astype(jnp.float32), exp3.astype(jnp.float32),
                        rtol=1e-2, atol=1e-2)

    print("KERNEL_OK")
</pallas_src>

<mosaic_0001>
module attributes {stable_mosaic.version = 11 : i64} {
  func.func @_scale_kernel(%arg0: i32, %arg1: memref<2x1024xf32, #tpu.memory_space<vmem>>, %arg2: memref<2x1024xf32, #tpu.memory_space<vmem>>) attributes {dimension_semantics = [#tpu.dimension_semantics<parallel>], iteration_bounds = array<i64: 1>, scalar_prefetch = 0 : i64, scratch_operands = 0 : i64, tpu.core_type = #tpu.core_type<tc>, window_params = [{transform_indices = @transform_0, window_bounds = array<i64: 2, 1024>}, {transform_indices = @transform_1, window_bounds = array<i64: 2, 1024>}]} {
    %c0 = arith.constant 0 : index
    %c0_0 = arith.constant 0 : index
    %0 = vector.load %arg1[%c0, %c0_0] : memref<2x1024xf32, #tpu.memory_space<vmem>>, vector<2x1024xf32>
    %cst = arith.constant 5.65685415 : f32
    %1 = vector.broadcast %cst : f32 to vector<2x1024xf32>
    %2 = arith.divf %0, %1 : vector<2x1024xf32>
    %c0_1 = arith.constant 0 : index
    %c0_2 = arith.constant 0 : index
    %3 = vector.load %arg2[%c0_1, %c0_2] : memref<2x1024xf32, #tpu.memory_space<vmem>>, vector<2x1024xf32>
    tpu.vector_store %arg2[%c0_1, %c0_2], %2 {strides = array<i32>} : memref<2x1024xf32, #tpu.memory_space<vmem>>, vector<2x1024xf32>,
    return
  }
  func.func @transform_0(%arg0: i32) -> (i32, i32) {
    %c0_i32 = arith.constant 0 : i32
    %c0_i32_0 = arith.constant 0 : i32
    return %arg0, %c0_i32 : i32, i32
  }
  func.func @transform_1(%arg0: i32) -> (i32, i32) {
    %c0_i32 = arith.constant 0 : i32
    %c0_i32_0 = arith.constant 0 : i32
    return %arg0, %c0_i32 : i32, i32
  }
}

</mosaic_0001>

<llo_original>
// kernel: tpu_custom_call.1
$region0: #{tpu_custom_call.1}
  #allocation0 [shape = 'u32[]', space=smem, size = 0x4, offset = 0x4, fixed_abs, tag = 'smem constant byte address 0x4 - core index']
  #allocation1 [shape = 'u32[144,128]{1,0:T(1,128)}', space=vmem, size = 0x12000, scoped, tag = 'internal scratch']
  %s0 = inlined_call_operand.hbm [shape: f32[2,1024], index: 0, kind: input, shape index: {}, may-alias: {0,1}]
  %s1 = inlined_call_operand.hbm [shape: f32[2,1024], index: 1, kind: output, shape index: {}, may-alias: {0,1}]
  %s2 = sld [smem:[#allocation0]]
  $region18: #{tpu_custom_call.1} parent=0
    _
  %s4 = ssub.s32 1, %s2
  %s5 = scalar_select 0, %s4, %s2
  $region1: #{tpu_custom_call.1} parent=0
    #allocation2 [shape = 'u8[8192]{0}', space=vmem, size = 0x2000, scoped, tag = 'input window, operand 0, single buffered']
    #allocation3 [shape = 's32[1]{0}', space=sflag, size = 0x4, scoped, tag = 'scoped memory for tpu_custom_call.1']
    #allocation4 [shape = 's32[1]{0}', space=sflag, size = 0x4, scoped, tag = 'scoped memory for tpu_custom_call.1']
    #allocation5 [shape = 'u8[8192]{0}', space=vmem, size = 0x2000, scoped, tag = 'output window, operand 0, single buffered']
    %6 = vsyncpa [#allocation3], 0
    %7 = vsyncpa [#allocation4], 0
    // Predicated region
    $region2: #{tpu_custom_call.1} parent=1 // pred_check
      _
    $region3: #{tpu_custom_call.1} parent=1 // pred_check_branch
      %9 = sbr.rel (0) target = $region5
    $region4: #{tpu_custom_call.1} parent=1 // pred_region
      %s11 = ssub.s32 256, 256
      %12 = vsyncadd [#allocation3], %s11
      %s14 = sshll.u32 [#allocation2], 4
      %s15 = int_to_ptr.vmem [resolvable:$true] %s14
      %17 = dma.hbm_to_vmem [thread:$0]  %s0, 256, %s15, [#allocation3]
    $region5: #{tpu_custom_call.1} parent=1 // pred_fallthru
      _
    // Predicated region
    $region6: #{tpu_custom_call.1} parent=1 // pred_check
      _
    $region7: #{tpu_custom_call.1} parent=1 // pred_check_branch
      %19 = sbr.rel (0) target = $region9
    $region8: #{tpu_custom_call.1} parent=1 // pred_region
      %20 = dma.done [#allocation3], 256
    $region9: #{tpu_custom_call.1} parent=1 // pred_fallthru
      _
    %v21 = vld [vmem:[#allocation2] sm:$0xff]
    %v22 = vld [vmem:[#allocation2 + $0x8] sm:$0xff]
    %v23 = vrcp.pop 5.656854
    %v24 = vmul.f32 %v21, %v23
    %v25 = vmul.f32 %v22, %v23
    %26 = vst [vmem:[#allocation5] sm:$0xff] %v24
    %27 = vst [vmem:[#allocation5 + $0x8] sm:$0xff] %v25
    // Predicated region
    $region10: #{tpu_custom_call.1} parent=1 // pred_check
      _
    $region11: #{tpu_custom_call.1} parent=1 // pred_check_branch
      %29 = sbr.rel (0) target = $region13
    $region12: #{tpu_custom_call.1} parent=1 // pred_region
      %s31 = ssub.s32 256, 256
      %32 = vsyncadd [#allocation4], %s31
      %s34 = sshll.u32 [#allocation5], 4
      %s35 = int_to_ptr.vmem [resolvable:$true] %s34
      %37 = dma.vmem_to_hbm [thread:$0]  %s35, 256, %s1, [#allocation4]
    $region13: #{tpu_custom_call.1} parent=1 // pred_fallthru
      _
    // Predicated region
    $region14: #{tpu_custom_call.1} parent=1 // pred_check
      _
    $region15: #{tpu_custom_call.1} parent=1 // pred_check_branch
      %39 = sbr.rel (0) target = $region17
    $region16: #{tpu_custom_call.1} parent=1 // pred_region
      %40 = dma.done [#allocation4], 256
    $region17: #{tpu_custom_call.1} parent=1 // pred_fallthru
      _
    %41 = vsyncpa [#allocation3], 1
    %42 = vsyncpa [#allocation4], 1

</llo_original>
